<compile_context>
chip_gen: v7x
topology: tpu7x:2x2x1
jax: 0.10.0
libtpu: 0.0.40
codegen_flags: <defaults>
</compile_context>

<pallas_src>
import functools

import jax
import jax.numpy as jnp
from jax.experimental import pallas as pl
from jax.experimental.pallas import tpu as pltpu


def _resnet_block_kernel(x_ref, w1_ref, w2_ref, b1_ref, s1_ref, t1_ref,
                         b2_ref, ab_ref, out_ref, *, H, W):
    """One image per grid step, layout (C, H*W) with H*W on lanes."""
    HW = H * W
    x = x_ref[0]                                              # (C, HW) f32

    # Column index of every flattened pixel. dx = +-1 taps that would wrap
    # across a row boundary are masked to zero; dy over/underflow lands in the
    # zero padding of the widened lane axis and needs no mask.
    col = jax.lax.broadcasted_iota(jnp.int32, (1, HW), 1) % W
    left_ok = col >= 1                                        # valid for dx = -1
    right_ok = col <= W - 2                                   # valid for dx = +1

    def conv3x3(v, w, b):
        """v: (Cin, HW) f32, w: (Cout, 9*Cin) bf16, b: (Cout, 1) f32."""
        cin = v.shape[0]
        zpad = jnp.zeros((cin, W + 1), jnp.float32)
        vp = jnp.concatenate([zpad, v, zpad], axis=1)         # (Cin, HW + 2W + 2)
        cols = []
        for dy in (-1, 0, 1):
            for dx in (-1, 0, 1):
                start = (W + 1) + dy * W + dx                 # static lane offset
                sl = vp[:, start:start + HW]                  # shifted view
                if dx == -1:
                    sl = jnp.where(left_ok, sl, 0.0)
                elif dx == 1:
                    sl = jnp.where(right_ok, sl, 0.0)
                cols.append(sl)
        im2col = jnp.concatenate(cols, axis=0)                # (9*Cin, HW)
        acc = jax.lax.dot_general(                            # single MXU pass
            w, im2col.astype(w.dtype),
            dimension_numbers=(((1,), (0,)), ((), ())),
            preferred_element_type=jnp.float32)               # (Cout, HW) f32
        return acc + b

    a1 = ab_ref[0]                                            # PReLU slopes (SMEM)
    a2 = ab_ref[1]

    h = conv3x3(x, w1_ref[...], b1_ref[...])                  # conv1 (+bias)
    h = jnp.maximum(h, 0.0) + a1 * jnp.minimum(h, 0.0)        # act1: PReLU
    h = h * s1_ref[...] + t1_ref[...]                         # bn1 (eval affine)
    g = conv3x3(h, w2_ref[...], b2_ref[...])                  # conv2 (+bias, bn2 folded)
    o = g + x                                                 # residual (VMEM-resident x)
    o = jnp.maximum(o, 0.0) + a2 * jnp.minimum(o, 0.0)        # act2: PReLU
    out_ref[0] = o.astype(out_ref.dtype)


def _fold_conv_weights(w_oihw):
    """PyTorch OIHW (Cout, Cin, 3, 3) -> (Cout, 9*Cin), tap-major / chan-minor."""
    cout, cin, kh, kw = w_oihw.shape
    w_hwio = jnp.transpose(w_oihw, (2, 3, 1, 0))              # (kh, kw, Cin, Cout)
    return w_hwio.reshape(kh * kw * cin, cout).T              # (Cout, 9*Cin)


def resnet_block_forward(x_nchw, params):
    """Exact ResnetBlock forward semantics (eval-mode BatchNorm).

    x_nchw: (N, C, H, W) float32. Returns (N, C, H, W) float32.
    """
    N, C, H, W = x_nchw.shape
    HW = H * W
    eps = 1e-5

    # BatchNorm eval-mode affine: bn(z) = s*z + t (per channel).
    s1 = params["bn1_gamma"] * jax.lax.rsqrt(params["bn1_var"] + eps)
    t1 = params["bn1_beta"] - params["bn1_mean"] * s1
    s2 = params["bn2_gamma"] * jax.lax.rsqrt(params["bn2_var"] + eps)
    t2 = params["bn2_beta"] - params["bn2_mean"] * s2

    w1_r = _fold_conv_weights(params["w1"])                   # (C, 9C)
    w2_r = _fold_conv_weights(params["w2"]) * s2[:, None]     # BN2 scale folded
    b2_eff = s2 * params["b2"] + t2                           # BN2 shift folded
    # BN1 cannot be folded into conv2 without breaking zero-padding at the
    # border, so it stays an explicit per-channel affine inside the kernel.

    x_flat = x_nchw.reshape(N, C, HW).astype(jnp.float32)     # lane dim = H*W
    prelu_ab = jnp.stack([params["a1"], params["a2"]]).astype(jnp.float32)

    kernel = functools.partial(_resnet_block_kernel, H=H, W=W)
    out_flat = pl.pallas_call(
        kernel,
        out_shape=jax.ShapeDtypeStruct((N, C, HW), jnp.float32),
        grid=(N,),
        in_specs=[
            pl.BlockSpec((1, C, HW), lambda n: (n, 0, 0)),        # x
            pl.BlockSpec((C, 9 * C), lambda n: (0, 0)),           # w1 (bf16)
            pl.BlockSpec((C, 9 * C), lambda n: (0, 0)),           # w2 (bf16, bn2 folded)
            pl.BlockSpec((C, 1), lambda n: (0, 0)),               # b1
            pl.BlockSpec((C, 1), lambda n: (0, 0)),               # bn1 scale
            pl.BlockSpec((C, 1), lambda n: (0, 0)),               # bn1 shift
            pl.BlockSpec((C, 1), lambda n: (0, 0)),               # b2 (bn2 folded)
            pl.BlockSpec(memory_space=pltpu.MemorySpace.SMEM),    # PReLU (a1, a2)
        ],
        out_specs=pl.BlockSpec((1, C, HW), lambda n: (n, 0, 0)),
        compiler_params=pltpu.CompilerParams(
            dimension_semantics=("parallel",)),
    )(
        x_flat,
        w1_r.astype(jnp.bfloat16),
        w2_r.astype(jnp.bfloat16),
        params["b1"].reshape(C, 1).astype(jnp.float32),
        s1.reshape(C, 1).astype(jnp.float32),
        t1.reshape(C, 1).astype(jnp.float32),
        b2_eff.reshape(C, 1).astype(jnp.float32),
        prelu_ab,
    )
    return out_flat.reshape(N, C, H, W)


def init_params(key, channels):
    """Synthetic PyTorch-shaped parameters (Conv2d OIHW, BN running stats, PReLU)."""
    ks = jax.random.split(key, 12)
    c = channels
    bound = 1.0 / (c * 9) ** 0.5                              # PyTorch conv default

    def conv_w(k):
        return jax.random.uniform(k, (c, c, 3, 3), jnp.float32, -bound, bound)

    def conv_b(k):
        return jax.random.uniform(k, (c,), jnp.float32, -bound, bound)

    return {
        "w1": conv_w(ks[0]), "b1": conv_b(ks[1]),
        "w2": conv_w(ks[2]), "b2": conv_b(ks[3]),
        "bn1_gamma": jax.random.uniform(ks[4], (c,), jnp.float32, 0.8, 1.2),
        "bn1_beta": 0.1 * jax.random.normal(ks[5], (c,), jnp.float32),
        "bn1_mean": 0.1 * jax.random.normal(ks[6], (c,), jnp.float32),
        "bn1_var": jax.random.uniform(ks[7], (c,), jnp.float32, 0.8, 1.2),
        "bn2_gamma": jax.random.uniform(ks[8], (c,), jnp.float32, 0.8, 1.2),
        "bn2_beta": 0.1 * jax.random.normal(ks[9], (c,), jnp.float32),
        "bn2_mean": 0.1 * jax.random.normal(ks[10], (c,), jnp.float32),
        "bn2_var": jax.random.uniform(ks[11], (c,), jnp.float32, 0.8, 1.2),
        "a1": jnp.float32(0.25), "a2": jnp.float32(0.25),     # PReLU default slope
    }


def _reference_forward(x, p, eps=1e-5):
    """Pure-JAX (f32) reference mirroring the PyTorch module, for validation."""
    def conv(v, w, b):
        out = jax.lax.conv_general_dilated(
            v, w, window_strides=(1, 1), padding=((1, 1), (1, 1)),
            dimension_numbers=("NCHW", "OIHW", "NCHW"))
        return out + b[None, :, None, None]

    def prelu(v, a):
        return jnp.maximum(v, 0.0) + a * jnp.minimum(v, 0.0)

    def bn(v, gamma, beta, mean, var):
        s = gamma / jnp.sqrt(var + eps)
        t = beta - mean * s
        return v * s[None, :, None, None] + t[None, :, None, None]

    h = prelu(conv(x, p["w1"], p["b1"]), p["a1"])
    h = bn(h, p["bn1_gamma"], p["bn1_beta"], p["bn1_mean"], p["bn1_var"])
    g = bn(conv(h, p["w2"], p["b2"]), p["bn2_gamma"], p["bn2_beta"],
           p["bn2_mean"], p["bn2_var"])
    return prelu(g + x, p["a2"])


if __name__ == "__main__":
    num_filter = 4
    N, H, W = 2, 16, 16

    key = jax.random.PRNGKey(0)
    k_x, k_p = jax.random.split(key)
    x = jax.random.uniform(k_x, (N, num_filter, H, W), jnp.float32, -1.0, 1.0)
    params = init_params(k_p, num_filter)

    fwd = jax.jit(resnet_block_forward)
    out = fwd(x, params)
    jax.block_until_ready(out)

    ref = _reference_forward(x, params)
    err = float(jnp.max(jnp.abs(out - ref)))
    assert out.shape == (N, num_filter, H, W)
    assert err < 1e-1, f"max abs error vs reference: {err}"   # bf16-MXU tolerance
    print("KERNEL_OK")
</pallas_src>

<mosaic_0001>
module attributes {stable_mosaic.version = 11 : i64} {
  func.func @_resnet_block_kernel(%arg0: i32, %arg1: memref<1x4x256xf32, #tpu.memory_space<vmem>>, %arg2: memref<4x36xbf16, #tpu.memory_space<vmem>>, %arg3: memref<4x36xbf16, #tpu.memory_space<vmem>>, %arg4: memref<4x1xf32, #tpu.memory_space<vmem>>, %arg5: memref<4x1xf32, #tpu.memory_space<vmem>>, %arg6: memref<4x1xf32, #tpu.memory_space<vmem>>, %arg7: memref<4x1xf32, #tpu.memory_space<vmem>>, %arg8: memref<2xf32, #tpu.memory_space<smem>>, %arg9: memref<1x4x256xf32, #tpu.memory_space<vmem>>) attributes {dimension_semantics = [#tpu.dimension_semantics<parallel>], iteration_bounds = array<i64: 2>, scalar_prefetch = 0 : i64, scratch_operands = 0 : i64, tpu.core_type = #tpu.core_type<tc>, window_params = [{transform_indices = @transform_0, window_bounds = array<i64: 1, 4, 256>}, {pipeline_mode = #tpu.pipeline_mode<synchronous>, transform_indices = @transform_1, window_bounds = array<i64: 4, 36>}, {pipeline_mode = #tpu.pipeline_mode<synchronous>, transform_indices = @transform_2, window_bounds = array<i64: 4, 36>}, {pipeline_mode = #tpu.pipeline_mode<synchronous>, transform_indices = @transform_3, window_bounds = array<i64: 4, 1>}, {pipeline_mode = #tpu.pipeline_mode<synchronous>, transform_indices = @transform_4, window_bounds = array<i64: 4, 1>}, {pipeline_mode = #tpu.pipeline_mode<synchronous>, transform_indices = @transform_5, window_bounds = array<i64: 4, 1>}, {pipeline_mode = #tpu.pipeline_mode<synchronous>, transform_indices = @transform_6, window_bounds = array<i64: 4, 1>}, {transform_indices = @transform_7, window_bounds = array<i64: 2>}, {transform_indices = @transform_8, window_bounds = array<i64: 1, 4, 256>}]} {
    %c0 = arith.constant 0 : index
    %c0_0 = arith.constant 0 : index
    %c0_1 = arith.constant 0 : index
    %0 = vector.load %arg1[%c0, %c0_0, %c0_1] : memref<1x4x256xf32, #tpu.memory_space<vmem>>, vector<1x4x256xf32>
    %1 = vector.shape_cast %0 : vector<1x4x256xf32> to vector<4x256xf32>
    %2 = tpu.iota {dimensions = array<i32: 1>} : vector<1x256xi32>
    %c16_i32 = arith.constant 16 : i32
    %c0_i32 = arith.constant 0 : i32
    %3 = arith.cmpi eq, %c16_i32, %c0_i32 : i32
    %c1_i32 = arith.constant 1 : i32
    %4 = arith.select %3, %c1_i32, %c16_i32 : i32
    %5 = vector.broadcast %4 : i32 to vector<1x256xi32>
    %6 = arith.remsi %2, %5 : vector<1x256xi32>
    %c0_i32_2 = arith.constant 0 : i32
    %7 = vector.broadcast %c0_i32_2 : i32 to vector<1x256xi32>
    %8 = arith.cmpi ne, %6, %7 : vector<1x256xi32>
    %c0_i32_3 = arith.constant 0 : i32
    %9 = vector.broadcast %c0_i32_3 : i32 to vector<1x256xi32>
    %10 = arith.cmpi slt, %6, %9 : vector<1x256xi32>
    %c0_i32_4 = arith.constant 0 : i32
    %11 = arith.cmpi slt, %4, %c0_i32_4 : i32
    %12 = vector.broadcast %11 : i1 to vector<1x256xi1>
    %13 = vector.broadcast %12 : vector<1x256xi1> to vector<1x256xi1>
    %14 = arith.xori %10, %13 : vector<1x256xi1>
    %15 = arith.andi %14, %8 : vector<1x256xi1>
    %16 = vector.broadcast %4 : i32 to vector<1x256xi32>
    %17 = arith.addi %6, %16 : vector<1x256xi32>
    %18 = arith.select %15, %17, %6 : vector<1x256xi1>, vector<1x256xi32>
    %c1_i32_5 = arith.constant 1 : i32
    %19 = vector.broadcast %c1_i32_5 : i32 to vector<1x256xi32>
    %20 = arith.cmpi sge, %18, %19 : vector<1x256xi32>
    %c14_i32 = arith.constant 14 : i32
    %21 = vector.broadcast %c14_i32 : i32 to vector<1x256xi32>
    %22 = arith.cmpi sle, %18, %21 : vector<1x256xi32>
    %c0_6 = arith.constant 0 : index
    %23 = memref.load %arg8[%c0_6] : memref<2xf32, #tpu.memory_space<smem>>
    %c1 = arith.constant 1 : index
    %24 = memref.load %arg8[%c1] : memref<2xf32, #tpu.memory_space<smem>>
    %c0_7 = arith.constant 0 : index
    %c0_8 = arith.constant 0 : index
    %25 = vector.load %arg2[%c0_7, %c0_8] : memref<4x36xbf16, #tpu.memory_space<vmem>>, vector<4x36xbf16>
    %c0_9 = arith.constant 0 : index
    %c0_10 = arith.constant 0 : index
    %26 = vector.load %arg4[%c0_9, %c0_10] : memref<4x1xf32, #tpu.memory_space<vmem>>, vector<4x1xf32>
    %cst = arith.constant 0.000000e+00 : f32
    %27 = vector.broadcast %cst : f32 to vector<4x17xf32>
    %28 = tpu.concatenate %27, %1, %27 in 1 : vector<4x17xf32>, vector<4x256xf32>, vector<4x17xf32> -> vector<4x290xf32>
    %29 = vector.extract_strided_slice %28 {offsets = [0, 0], sizes = [4, 256], strides = [1, 1]} : vector<4x290xf32> to vector<4x256xf32>
    %cst_11 = arith.constant 0.000000e+00 : f32
    %30 = vector.shape_cast %20 : vector<1x256xi1> to vector<1x256xi1>
    %31 = vector.broadcast %30 : vector<1x256xi1> to vector<4x256xi1>
    %32 = vector.broadcast %cst_11 : f32 to vector<4x256xf32>
    %33 = arith.select %31, %29, %32 : vector<4x256xi1>, vector<4x256xf32>
    %34 = vector.extract_strided_slice %28 {offsets = [0, 1], sizes = [4, 256], strides = [1, 1]} : vector<4x290xf32> to vector<4x256xf32>
    %35 = vector.extract_strided_slice %28 {offsets = [0, 2], sizes = [4, 256], strides = [1, 1]} : vector<4x290xf32> to vector<4x256xf32>
    %cst_12 = arith.constant 0.000000e+00 : f32
    %36 = vector.shape_cast %22 : vector<1x256xi1> to vector<1x256xi1>
    %37 = vector.broadcast %36 : vector<1x256xi1> to vector<4x256xi1>
    %38 = vector.broadcast %cst_12 : f32 to vector<4x256xf32>
    %39 = arith.select %37, %35, %38 : vector<4x256xi1>, vector<4x256xf32>
    %40 = vector.extract_strided_slice %28 {offsets = [0, 16], sizes = [4, 256], strides = [1, 1]} : vector<4x290xf32> to vector<4x256xf32>
    %cst_13 = arith.constant 0.000000e+00 : f32
    %41 = vector.shape_cast %20 : vector<1x256xi1> to vector<1x256xi1>
    %42 = vector.broadcast %41 : vector<1x256xi1> to vector<4x256xi1>
    %43 = vector.broadcast %cst_13 : f32 to vector<4x256xf32>
    %44 = arith.select %42, %40, %43 : vector<4x256xi1>, vector<4x256xf32>
    %45 = vector.extract_strided_slice %28 {offsets = [0, 17], sizes = [4, 256], strides = [1, 1]} : vector<4x290xf32> to vector<4x256xf32>
    %46 = vector.extract_strided_slice %28 {offsets = [0, 18], sizes = [4, 256], strides = [1, 1]} : vector<4x290xf32> to vector<4x256xf32>
    %cst_14 = arith.constant 0.000000e+00 : f32
    %47 = vector.shape_cast %22 : vector<1x256xi1> to vector<1x256xi1>
    %48 = vector.broadcast %47 : vector<1x256xi1> to vector<4x256xi1>
    %49 = vector.broadcast %cst_14 : f32 to vector<4x256xf32>
    %50 = arith.select %48, %46, %49 : vector<4x256xi1>, vector<4x256xf32>
    %51 = vector.extract_strided_slice %28 {offsets = [0, 32], sizes = [4, 256], strides = [1, 1]} : vector<4x290xf32> to vector<4x256xf32>
    %cst_15 = arith.constant 0.000000e+00 : f32
    %52 = vector.shape_cast %20 : vector<1x256xi1> to vector<1x256xi1>
    %53 = vector.broadcast %52 : vector<1x256xi1> to vector<4x256xi1>
    %54 = vector.broadcast %cst_15 : f32 to vector<4x256xf32>
    %55 = arith.select %53, %51, %54 : vector<4x256xi1>, vector<4x256xf32>
    %56 = vector.extract_strided_slice %28 {offsets = [0, 33], sizes = [4, 256], strides = [1, 1]} : vector<4x290xf32> to vector<4x256xf32>
    %57 = vector.extract_strided_slice %28 {offsets = [0, 34], sizes = [4, 256], strides = [1, 1]} : vector<4x290xf32> to vector<4x256xf32>
    %cst_16 = arith.constant 0.000000e+00 : f32
    %58 = vector.shape_cast %22 : vector<1x256xi1> to vector<1x256xi1>
    %59 = vector.broadcast %58 : vector<1x256xi1> to vector<4x256xi1>
    %60 = vector.broadcast %cst_16 : f32 to vector<4x256xf32>
    %61 = arith.select %59, %57, %60 : vector<4x256xi1>, vector<4x256xf32>
    %62 = tpu.concatenate %33, %34, %39, %44, %45, %50, %55, %56, %61 in 0 : vector<4x256xf32>, vector<4x256xf32>, vector<4x256xf32>, vector<4x256xf32>, vector<4x256xf32>, vector<4x256xf32>, vector<4x256xf32>, vector<4x256xf32>, vector<4x256xf32> -> vector<36x256xf32>
    %63 = arith.truncf %62 : vector<36x256xf32> to vector<36x256xbf16>
    %cst_17 = arith.constant dense<0.000000e+00> : vector<4x256xf32>
    %64 = tpu.matmul %25, %63, %cst_17 {dimension_numbers = #tpu.dot_dimension_numbers<[1], [0], [0], [1], [0, 0, 1, 1], [], []>} : vector<4x36xbf16>, vector<36x256xbf16>, vector<4x256xf32> -> vector<4x256xf32>
    %65 = vector.broadcast %26 : vector<4x1xf32> to vector<4x256xf32>
    %66 = arith.addf %64, %65 : vector<4x256xf32>
    %cst_18 = arith.constant 0.000000e+00 : f32
    %67 = vector.broadcast %cst_18 : f32 to vector<4x256xf32>
    %68 = arith.maximumf %66, %67 : vector<4x256xf32>
    %cst_19 = arith.constant 0.000000e+00 : f32
    %69 = vector.broadcast %cst_19 : f32 to vector<4x256xf32>
    %70 = arith.minimumf %66, %69 : vector<4x256xf32>
    %71 = vector.broadcast %23 : f32 to vector<4x256xf32>
    %72 = arith.mulf %71, %70 : vector<4x256xf32>
    %73 = arith.addf %68, %72 : vector<4x256xf32>
    %c0_20 = arith.constant 0 : index
    %c0_21 = arith.constant 0 : index
    %74 = vector.load %arg5[%c0_20, %c0_21] : memref<4x1xf32, #tpu.memory_space<vmem>>, vector<4x1xf32>
    %75 = vector.broadcast %74 : vector<4x1xf32> to vector<4x256xf32>
    %76 = arith.mulf %73, %75 : vector<4x256xf32>
    %c0_22 = arith.constant 0 : index
    %c0_23 = arith.constant 0 : index
    %77 = vector.load %arg6[%c0_22, %c0_23] : memref<4x1xf32, #tpu.memory_space<vmem>>, vector<4x1xf32>
    %78 = vector.broadcast %77 : vector<4x1xf32> to vector<4x256xf32>
    %79 = arith.addf %76, %78 : vector<4x256xf32>
    %c0_24 = arith.constant 0 : index
    %c0_25 = arith.constant 0 : index
    %80 = vector.load %arg3[%c0_24, %c0_25] : memref<4x36xbf16, #tpu.memory_space<vmem>>, vector<4x36xbf16>
    %c0_26 = arith.constant 0 : index
    %c0_27 = arith.constant 0 : index
    %81 = vector.load %arg7[%c0_26, %c0_27] : memref<4x1xf32, #tpu.memory_space<vmem>>, vector<4x1xf32>
    %cst_28 = arith.constant 0.000000e+00 : f32
    %82 = vector.broadcast %cst_28 : f32 to vector<4x17xf32>
    %83 = tpu.concatenate %82, %79, %82 in 1 : vector<4x17xf32>, vector<4x256xf32>, vector<4x17xf32> -> vector<4x290xf32>
    %84 = vector.extract_strided_slice %83 {offsets = [0, 0], sizes = [4, 256], strides = [1, 1]} : vector<4x290xf32> to vector<4x256xf32>
    %cst_29 = arith.constant 0.000000e+00 : f32
    %85 = vector.shape_cast %20 : vector<1x256xi1> to vector<1x256xi1>
    %86 = vector.broadcast %85 : vector<1x256xi1> to vector<4x256xi1>
    %87 = vector.broadcast %cst_29 : f32 to vector<4x256xf32>
    %88 = arith.select %86, %84, %87 : vector<4x256xi1>, vector<4x256xf32>
    %89 = vector.extract_strided_slice %83 {offsets = [0, 1], sizes = [4, 256], strides = [1, 1]} : vector<4x290xf32> to vector<4x256xf32>
    %90 = vector.extract_strided_slice %83 {offsets = [0, 2], sizes = [4, 256], strides = [1, 1]} : vector<4x290xf32> to vector<4x256xf32>
    %cst_30 = arith.constant 0.000000e+00 : f32
    %91 = vector.shape_cast %22 : vector<1x256xi1> to vector<1x256xi1>
    %92 = vector.broadcast %91 : vector<1x256xi1> to vector<4x256xi1>
    %93 = vector.broadcast %cst_30 : f32 to vector<4x256xf32>
    %94 = arith.select %92, %90, %93 : vector<4x256xi1>, vector<4x256xf32>
    %95 = vector.extract_strided_slice %83 {offsets = [0, 16], sizes = [4, 256], strides = [1, 1]} : vector<4x290xf32> to vector<4x256xf32>
    %cst_31 = arith.constant 0.000000e+00 : f32
    %96 = vector.shape_cast %20 : vector<1x256xi1> to vector<1x256xi1>
    %97 = vector.broadcast %96 : vector<1x256xi1> to vector<4x256xi1>
    %98 = vector.broadcast %cst_31 : f32 to vector<4x256xf32>
    %99 = arith.select %97, %95, %98 : vector<4x256xi1>, vector<4x256xf32>
    %100 = vector.extract_strided_slice %83 {offsets = [0, 17], sizes = [4, 256], strides = [1, 1]} : vector<4x290xf32> to vector<4x256xf32>
    %101 = vector.extract_strided_slice %83 {offsets = [0, 18], sizes = [4, 256], strides = [1, 1]} : vector<4x290xf32> to vector<4x256xf32>
    %cst_32 = arith.constant 0.000000e+00 : f32
    %102 = vector.shape_cast %22 : vector<1x256xi1> to vector<1x256xi1>
    %103 = vector.broadcast %102 : vector<1x256xi1> to vector<4x256xi1>
    %104 = vector.broadcast %cst_32 : f32 to vector<4x256xf32>
    %105 = arith.select %103, %101, %104 : vector<4x256xi1>, vector<4x256xf32>
    %106 = vector.extract_strided_slice %83 {offsets = [0, 32], sizes = [4, 256], strides = [1, 1]} : vector<4x290xf32> to vector<4x256xf32>
    %cst_33 = arith.constant 0.000000e+00 : f32
    %107 = vector.shape_cast %20 : vector<1x256xi1> to vector<1x256xi1>
    %108 = vector.broadcast %107 : vector<1x256xi1> to vector<4x256xi1>
    %109 = vector.broadcast %cst_33 : f32 to vector<4x256xf32>
    %110 = arith.select %108, %106, %109 : vector<4x256xi1>, vector<4x256xf32>
    %111 = vector.extract_strided_slice %83 {offsets = [0, 33], sizes = [4, 256], strides = [1, 1]} : vector<4x290xf32> to vector<4x256xf32>
    %112 = vector.extract_strided_slice %83 {offsets = [0, 34], sizes = [4, 256], strides = [1, 1]} : vector<4x290xf32> to vector<4x256xf32>
    %cst_34 = arith.constant 0.000000e+00 : f32
    %113 = vector.shape_cast %22 : vector<1x256xi1> to vector<1x256xi1>
    %114 = vector.broadcast %113 : vector<1x256xi1> to vector<4x256xi1>
    %115 = vector.broadcast %cst_34 : f32 to vector<4x256xf32>
    %116 = arith.select %114, %112, %115 : vector<4x256xi1>, vector<4x256xf32>
    %117 = tpu.concatenate %88, %89, %94, %99, %100, %105, %110, %111, %116 in 0 : vector<4x256xf32>, vector<4x256xf32>, vector<4x256xf32>, vector<4x256xf32>, vector<4x256xf32>, vector<4x256xf32>, vector<4x256xf32>, vector<4x256xf32>, vector<4x256xf32> -> vector<36x256xf32>
    %118 = arith.truncf %117 : vector<36x256xf32> to vector<36x256xbf16>
    %cst_35 = arith.constant dense<0.000000e+00> : vector<4x256xf32>
    %119 = tpu.matmul %80, %118, %cst_35 {dimension_numbers = #tpu.dot_dimension_numbers<[1], [0], [0], [1], [0, 0, 1, 1], [], []>} : vector<4x36xbf16>, vector<36x256xbf16>, vector<4x256xf32> -> vector<4x256xf32>
    %120 = vector.broadcast %81 : vector<4x1xf32> to vector<4x256xf32>
    %121 = arith.addf %119, %120 : vector<4x256xf32>
    %122 = arith.addf %121, %1 : vector<4x256xf32>
    %cst_36 = arith.constant 0.000000e+00 : f32
    %123 = vector.broadcast %cst_36 : f32 to vector<4x256xf32>
    %124 = arith.maximumf %122, %123 : vector<4x256xf32>
    %cst_37 = arith.constant 0.000000e+00 : f32
    %125 = vector.broadcast %cst_37 : f32 to vector<4x256xf32>
    %126 = arith.minimumf %122, %125 : vector<4x256xf32>
    %127 = vector.broadcast %24 : f32 to vector<4x256xf32>
    %128 = arith.mulf %127, %126 : vector<4x256xf32>
    %129 = arith.addf %124, %128 : vector<4x256xf32>
    %c0_38 = arith.constant 0 : index
    %c0_39 = arith.constant 0 : index
    %c0_40 = arith.constant 0 : index
    %130 = vector.load %arg9[%c0_38, %c0_39, %c0_40] : memref<1x4x256xf32, #tpu.memory_space<vmem>>, vector<1x4x256xf32>
    %131 = vector.shape_cast %130 : vector<1x4x256xf32> to vector<4x256xf32>
    %132 = vector.shape_cast %129 : vector<4x256xf32> to vector<1x4x256xf32>
    tpu.vector_store %arg9[%c0_38, %c0_39, %c0_40], %132 {strides = array<i32>} : memref<1x4x256xf32, #tpu.memory_space<vmem>>, vector<1x4x256xf32>,
    return
  }
  func.func @transform_0(%arg0: i32) -> (i32, i32, i32) {
    %c0_i32 = arith.constant 0 : i32
    %c0_i32_0 = arith.constant 0 : i32
    %c0_i32_1 = arith.constant 0 : i32
    return %arg0, %c0_i32, %c0_i32_0 : i32, i32, i32
  }
  func.func @transform_1(%arg0: i32) -> (i32, i32) {
    %c0_i32 = arith.constant 0 : i32
    %c0_i32_0 = arith.constant 0 : i32
    %c0_i32_1 = arith.constant 0 : i32
    return %c0_i32, %c0_i32_0 : i32, i32
  }
  func.func @transform_2(%arg0: i32) -> (i32, i32) {
    %c0_i32 = arith.constant 0 : i32
    %c0_i32_0 = arith.constant 0 : i32
    %c0_i32_1 = arith.constant 0 : i32
    return %c0_i32, %c0_i32_0 : i32, i32
  }
  func.func @transform_3(%arg0: i32) -> (i32, i32) {
    %c0_i32 = arith.constant 0 : i32
    %c0_i32_0 = arith.constant 0 : i32
    %c0_i32_1 = arith.constant 0 : i32
    return %c0_i32, %c0_i32_0 : i32, i32
  }
  func.func @transform_4(%arg0: i32) -> (i32, i32) {
    %c0_i32 = arith.constant 0 : i32
    %c0_i32_0 = arith.constant 0 : i32
    %c0_i32_1 = arith.constant 0 : i32
    return %c0_i32, %c0_i32_0 : i32, i32
  }
  func.func @transform_5(%arg0: i32) -> (i32, i32) {
    %c0_i32 = arith.constant 0 : i32
    %c0_i32_0 = arith.constant 0 : i32
    %c0_i32_1 = arith.constant 0 : i32
    return %c0_i32, %c0_i32_0 : i32, i32
  }
  func.func @transform_6(%arg0: i32) -> (i32, i32) {
    %c0_i32 = arith.constant 0 : i32
    %c0_i32_0 = arith.constant 0 : i32
    %c0_i32_1 = arith.constant 0 : i32
    return %c0_i32, %c0_i32_0 : i32, i32
  }
  func.func @transform_7(%arg0: i32) -> i32 {
    %c0_i32 = arith.constant 0 : i32
    %c0_i32_0 = arith.constant 0 : i32
    return %c0_i32 : i32
  }
  func.func @transform_8(%arg0: i32) -> (i32, i32, i32) {
    %c0_i32 = arith.constant 0 : i32
    %c0_i32_0 = arith.constant 0 : i32
    %c0_i32_1 = arith.constant 0 : i32
    return %arg0, %c0_i32, %c0_i32_0 : i32, i32, i32
  }
}

</mosaic_0001>

<llo_original>
// kernel: resnet_block_forward.1
$region0: #{resnet_block_forward.1}
  #allocation0 [shape = 'u32[]', space=smem, size = 0x4, offset = 0x4, fixed_abs, tag = 'smem constant byte address 0x4 - core index']
  #allocation1 [shape = 'u32[144,128]{1,0:T(1,128)}', space=vmem, size = 0x12000, scoped, tag = 'internal scratch']
  %s0 = inlined_call_operand.vmem [shape: f32[2,4,256], index: 0, kind: input, shape index: {}]
  %s1 = inlined_call_operand.vmem [shape: bf16[4,36], index: 1, kind: input, shape index: {}]
  %s2 = inlined_call_operand.vmem [shape: bf16[4,36], index: 2, kind: input, shape index: {}]
  %s3 = inlined_call_operand.vmem [shape: f32[4,1], index: 3, kind: input, shape index: {}]
  %s4 = inlined_call_operand.vmem [shape: f32[4,1], index: 4, kind: input, shape index: {}]
  %s5 = inlined_call_operand.vmem [shape: f32[4,1], index: 5, kind: input, shape index: {}]
  %s6 = inlined_call_operand.vmem [shape: f32[4,1], index: 6, kind: input, shape index: {}]
  %s7 = inlined_call_operand.vmem [shape: f32[2], index: 7, kind: input, shape index: {}]
  %s8 = inlined_call_operand.vmem [shape: f32[2,4,256], index: 8, kind: output, shape index: {}]
  %s9 = sld [smem:[#allocation0]]
  $region69: #{resnet_block_forward.1} parent=0
    _
  %s11 = ssub.s32 1, %s9
  %s12 = scalar_select 0, %s11, %s9
  $region1: #{resnet_block_forward.1} parent=0
    #allocation2 [shape = 'u8[512]{0}', space=smem, size = 0x200, scoped, tag = 'input window, operand 7, single buffered']
    #allocation3 [shape = 's32[2]{0}', space=sflag, size = 0x8, scoped, tag = 'scoped memory for resnet_block_forward.1']
    %13 = vsyncpa [#allocation3], 0
    loop: start=0, step=1, limit=4
    $region2: #{resnet_block_forward.1} parent=1 // loop_pre_header
      _
    $region3: #{resnet_block_forward.1} parent=1 // loop_header
      %s15 = sphi 0, %s19
      %p16 = scmp.ge.s32.totalorder %s15, 4
      %s25 = sphi 0, %s27
      %s28 = sphi 0, %s25
      %s29 = sphi 0, %s28
      %s45 = sphi 0, %s29
      %s49 = sphi 0, %s49
      %s51 = sphi 0, %s49
      %s52 = sphi 0, %s51
      %s66 = sphi 0, %s52
      %s70 = sphi 0, %s70
      %s72 = sphi 0, %s70
      %s73 = sphi 0, %s72
      %s87 = sphi 0, %s73
      %s91 = sphi 0, %s91
      %s93 = sphi 0, %s91
      %s94 = sphi 0, %s93
      %s108 = sphi 0, %s94
      %s112 = sphi 0, %s112
      %s114 = sphi 0, %s112
      %s115 = sphi 0, %s114
      %s129 = sphi 0, %s115
      %s133 = sphi 0, %s133
      %s135 = sphi 0, %s133
      %s136 = sphi 0, %s135
      %s150 = sphi 0, %s136
      %s154 = sphi 0, %s154
      %s156 = sphi 0, %s154
      %s157 = sphi 0, %s156
      %s171 = sphi 0, %s157
      %s175 = sphi 0, %s175
      %s177 = sphi 0, %s175
      %s178 = sphi 0, %s177
      %s192 = sphi 0, %s178
      %s198 = sphi 0, %s200
      %s201 = sphi 0, %s198
      %s202 = sphi 0, %s201
      %s218 = sphi 0, %s202
    $region4: #{resnet_block_forward.1} parent=1 // loop_header_branch
      %18 = sbr.rel (%p16) target = $region8
    $region5: #{resnet_block_forward.1} parent=1 // loop_body
      %s20 = ssub.s32 %s15, 1
      %s21 = ssub.s32 %s15, 2
      %s22 = sadd.s32 %s15, 1
      %s23 = ssub.s32 %s15, %s22
      %p24 = scmp.eq.s32.totalorder %s23, 0
      %s26 = sadd.s32 %s25, 1
      %s27 = scalar_select %p24, %s25, %s26
      %p30 = pneg %p24
      %p31 = scmp.eq.s32.totalorder %s15, 1
      %p32 = por %p30, %p31
      %p33 = scmp.ne.s32.totalorder %s25, %s28
      %p34 = scmp.eq.s32.totalorder %s15, 0
      %p35 = por %p33, %p34
      %p36 = scmp.ne.s32.totalorder %s25, %s28
      %p37 = scmp.eq.s32.totalorder %s20, 1
      %p38 = por %p36, %p37
      %p39 = scmp.ne.s32.totalorder %s28, %s29
      %p40 = scmp.eq.s32.totalorder %s20, 0
      %p41 = por %p39, %p40
      %p42 = scmp.ne.s32.totalorder %s28, %s29
      %p43 = scmp.eq.s32.totalorder %s21, 1
      %p44 = por %p42, %p43
      %p46 = scmp.ne.s32.totalorder %s29, %s45
      %p47 = scmp.eq.s32.totalorder %s21, 0
      %p48 = por %p46, %p47
      %s50 = sadd.s32 %s49, 1
      %p53 = scmp.eq.s32.totalorder %s15, 1
      %p54 = scmp.ne.s32.totalorder %s49, %s51
      %p55 = scmp.eq.s32.totalorder %s15, 0
      %p56 = por %p54, %p55
      %p57 = scmp.ne.s32.totalorder %s49, %s51
      %p58 = scmp.eq.s32.totalorder %s20, 1
      %p59 = por %p57, %p58
      %p60 = scmp.ne.s32.totalorder %s51, %s52
      %p61 = scmp.eq.s32.totalorder %s20, 0
      %p62 = por %p60, %p61
      %p63 = scmp.ne.s32.totalorder %s51, %s52
      %p64 = scmp.eq.s32.totalorder %s21, 1
      %p65 = por %p63, %p64
      %p67 = scmp.ne.s32.totalorder %s52, %s66
      %p68 = scmp.eq.s32.totalorder %s21, 0
      %p69 = por %p67, %p68
      %s71 = sadd.s32 %s70, 1
      %p74 = scmp.eq.s32.totalorder %s15, 1
      %p75 = scmp.ne.s32.totalorder %s70, %s72
      %p76 = scmp.eq.s32.totalorder %s15, 0
      %p77 = por %p75, %p76
      %p78 = scmp.ne.s32.totalorder %s70, %s72
      %p79 = scmp.eq.s32.totalorder %s20, 1
      %p80 = por %p78, %p79
      %p81 = scmp.ne.s32.totalorder %s72, %s73
      %p82 = scmp.eq.s32.totalorder %s20, 0
      %p83 = por %p81, %p82
      %p84 = scmp.ne.s32.totalorder %s72, %s73
      %p85 = scmp.eq.s32.totalorder %s21, 1
      %p86 = por %p84, %p85
      %p88 = scmp.ne.s32.totalorder %s73, %s87
      %p89 = scmp.eq.s32.totalorder %s21, 0
      %p90 = por %p88, %p89
      %s92 = sadd.s32 %s91, 1
      %p95 = scmp.eq.s32.totalorder %s15, 1
      %p96 = scmp.ne.s32.totalorder %s91, %s93
      %p97 = scmp.eq.s32.totalorder %s15, 0
      %p98 = por %p96, %p97
      %p99 = scmp.ne.s32.totalorder %s91, %s93
      %p100 = scmp.eq.s32.totalorder %s20, 1
      %p101 = por %p99, %p100
      %p102 = scmp.ne.s32.totalorder %s93, %s94
      %p103 = scmp.eq.s32.totalorder %s20, 0
      %p104 = por %p102, %p103
      %p105 = scmp.ne.s32.totalorder %s93, %s94
      %p106 = scmp.eq.s32.totalorder %s21, 1
      %p107 = por %p105, %p106
      %p109 = scmp.ne.s32.totalorder %s94, %s108
      %p110 = scmp.eq.s32.totalorder %s21, 0
      %p111 = por %p109, %p110
      %s113 = sadd.s32 %s112, 1
      %p116 = scmp.eq.s32.totalorder %s15, 1
      %p117 = scmp.ne.s32.totalorder %s112, %s114
      %p118 = scmp.eq.s32.totalorder %s15, 0
      %p119 = por %p117, %p118
      %p120 = scmp.ne.s32.totalorder %s112, %s114
      %p121 = scmp.eq.s32.totalorder %s20, 1
      %p122 = por %p120, %p121
      %p123 = scmp.ne.s32.totalorder %s114, %s115
      %p124 = scmp.eq.s32.totalorder %s20, 0
      %p125 = por %p123, %p124
      %p126 = scmp.ne.s32.totalorder %s114, %s115
      %p127 = scmp.eq.s32.totalorder %s21, 1
      %p128 = por %p126, %p127
      %p130 = scmp.ne.s32.totalorder %s115, %s129
      %p131 = scmp.eq.s32.totalorder %s21, 0
      %p132 = por %p130, %p131
      %s134 = sadd.s32 %s133, 1
      %p137 = scmp.eq.s32.totalorder %s15, 1
      %p138 = scmp.ne.s32.totalorder %s133, %s135
      %p139 = scmp.eq.s32.totalorder %s15, 0
      %p140 = por %p138, %p139
      %p141 = scmp.ne.s32.totalorder %s133, %s135
      %p142 = scmp.eq.s32.totalorder %s20, 1
      %p143 = por %p141, %p142
      %p144 = scmp.ne.s32.totalorder %s135, %s136
      %p145 = scmp.eq.s32.totalorder %s20, 0
      %p146 = por %p144, %p145
      %p147 = scmp.ne.s32.totalorder %s135, %s136
      %p148 = scmp.eq.s32.totalorder %s21, 1
      %p149 = por %p147, %p148
      %p151 = scmp.ne.s32.totalorder %s136, %s150
      %p152 = scmp.eq.s32.totalorder %s21, 0
      %p153 = por %p151, %p152
      %s155 = sadd.s32 %s154, 1
      %p158 = scmp.eq.s32.totalorder %s15, 1
      %p159 = scmp.ne.s32.totalorder %s154, %s156
      %p160 = scmp.eq.s32.totalorder %s15, 0
      %p161 = por %p159, %p160
      %p162 = scmp.ne.s32.totalorder %s154, %s156
      %p163 = scmp.eq.s32.totalorder %s20, 1
      %p164 = por %p162, %p163
      %p165 = scmp.ne.s32.totalorder %s156, %s157
      %p166 = scmp.eq.s32.totalorder %s20, 0
      %p167 = por %p165, %p166
      %p168 = scmp.ne.s32.totalorder %s156, %s157
      %p169 = scmp.eq.s32.totalorder %s21, 1
      %p170 = por %p168, %p169
      %p172 = scmp.ne.s32.totalorder %s157, %s171
      %p173 = scmp.eq.s32.totalorder %s21, 0
      %p174 = por %p172, %p173
      %s176 = sadd.s32 %s175, 1
      %p179 = scmp.eq.s32.totalorder %s15, 1
      %p180 = scmp.ne.s32.totalorder %s175, %s177
      %p181 = scmp.eq.s32.totalorder %s15, 0
      %p182 = por %p180, %p181
      %p183 = scmp.ne.s32.totalorder %s175, %s177
      %p184 = scmp.eq.s32.totalorder %s20, 1
      %p185 = por %p183, %p184
      %p186 = scmp.ne.s32.totalorder %s177, %s178
      %p187 = scmp.eq.s32.totalorder %s20, 0
      %p188 = por %p186, %p187
      %p189 = scmp.ne.s32.totalorder %s177, %s178
      %p190 = scmp.eq.s32.totalorder %s21, 1
      %p191 = por %p189, %p190
      %p193 = scmp.ne.s32.totalorder %s178, %s192
      %p194 = scmp.eq.s32.totalorder %s21, 0
      %p195 = por %p193, %p194
      %s196 = ssub.s32 %s15, %s22
      %p197 = scmp.eq.s32.totalorder %s196, 0
      %s199 = sadd.s32 %s198, 1
      %s200 = scalar_select %p197, %s198, %s199
      %p203 = pneg %p197
      %p204 = scmp.eq.s32.totalorder %s15, 1
      %p205 = por %p203, %p204
      %p206 = scmp.ne.s32.totalorder %s198, %s201
      %p207 = scmp.eq.s32.totalorder %s15, 0
      %p208 = por %p206, %p207
      %p209 = scmp.ne.s32.totalorder %s198, %s201
      %p210 = scmp.eq.s32.totalorder %s20, 1
      %p211 = por %p209, %p210
      %p212 = scmp.ne.s32.totalorder %s201, %s202
      %p213 = scmp.eq.s32.totalorder %s20, 0
      %p214 = por %p212, %p213
      %p215 = scmp.ne.s32.totalorder %s201, %s202
      %p216 = scmp.eq.s32.totalorder %s21, 1
      %p217 = por %p215, %p216
      %p219 = scmp.ne.s32.totalorder %s202, %s218
      %p220 = scmp.eq.s32.totalorder %s21, 0
      %p221 = por %p219, %p220
      %p222 = scmp.le.s32.totalorder 1, %s15
      %p223 = scmp.lt.s32.totalorder %s15, 3
      %p224 = pnand %p222, %p223
      %p225 = pneg %p224
      // Predicated region
      $region9: #{resnet_block_forward.1} parent=5 // pred_check
        _
      $region10: #{resnet_block_forward.1} parent=5 // pred_check_branch
        %227 = sbr.rel (%p224) target = $region12
      $region11: #{resnet_block_forward.1} parent=5 // pred_region
        %s228 = ssub.s32 %s15, 1
        // Predicated region
        $region13: #{resnet_block_forward.1} parent=11 // pred_check
          %p229 = pneg %p62
        $region14: #{resnet_block_forward.1} parent=11 // pred_check_branch
          %231 = sbr.rel (%p229) target = $region16
        $region15: #{resnet_block_forward.1} parent=11 // pred_region
          _
        $region16: #{resnet_block_forward.1} parent=11 // pred_fallthru
          _
        // Predicated region
        $region17: #{resnet_block_forward.1} parent=11 // pred_check
          %p232 = pneg %p83
        $region18: #{resnet_block_forward.1} parent=11 // pred_check_branch
          %234 = sbr.rel (%p232) target = $region20
        $region19: #{resnet_block_forward.1} parent=11 // pred_region
          _
        $region20: #{resnet_block_forward.1} parent=11 // pred_fallthru
          _
        // Predicated region
        $region21: #{resnet_block_forward.1} parent=11 // pred_check
          %p235 = pneg %p104
        $region22: #{resnet_block_forward.1} parent=11 // pred_check_branch
          %237 = sbr.rel (%p235) target = $region24
        $region23: #{resnet_block_forward.1} parent=11 // pred_region
          _
        $region24: #{resnet_block_forward.1} parent=11 // pred_fallthru
          _
        // Predicated region
        $region25: #{resnet_block_forward.1} parent=11 // pred_check
          %p238 = pneg %p125
        $region26: #{resnet_block_forward.1} parent=11 // pred_check_branch
          %240 = sbr.rel (%p238) target = $region28
        $region27: #{resnet_block_forward.1} parent=11 // pred_region
          _
        $region28: #{resnet_block_forward.1} parent=11 // pred_fallthru
          _
        // Predicated region
        $region29: #{resnet_block_forward.1} parent=11 // pred_check
          %p241 = pneg %p146
        $region30: #{resnet_block_forward.1} parent=11 // pred_check_branch
          %243 = sbr.rel (%p241) target = $region32
        $region31: #{resnet_block_forward.1} parent=11 // pred_region
          _
        $region32: #{resnet_block_forward.1} parent=11 // pred_fallthru
          _
        // Predicated region
        $region33: #{resnet_block_forward.1} parent=11 // pred_check
          %p244 = pneg %p167
        $region34: #{resnet_block_forward.1} parent=11 // pred_check_branch
          %246 = sbr.rel (%p244) target = $region36
        $region35: #{resnet_block_forward.1} parent=11 // pred_region
          _
        $region36: #{resnet_block_forward.1} parent=11 // pred_fallthru
          _
        // Predicated region
        $region37: #{resnet_block_forward.1} parent=11 // pred_check
          %p247 = pneg %p188
        $region38: #{resnet_block_forward.1} parent=11 // pred_check_branch
          %249 = sbr.rel (%p247) target = $region40
        $region39: #{resnet_block_forward.1} parent=11 // pred_region
          %s251 = ssub.s32 16, 16
          %252 = vsyncadd [#allocation3], %s251
          %s254 = sshll.u32 %s7, 4
          %s255 = int_to_ptr.vmem [resolvable:$true] %s254
          %257 = dma.vmem_to_smem %s255, 16, [#allocation2], [#allocation3]
        $region40: #{resnet_block_forward.1} parent=11 // pred_fallthru
          _
      $region12: #{resnet_block_forward.1} parent=5 // pred_fallthru
        _
      %p258 = scmp.lt.s32.totalorder %s15, 2
      // Predicated region
      $region41: #{resnet_block_forward.1} parent=5 // pred_check
        %p259 = pneg %p258
      $region42: #{resnet_block_forward.1} parent=5 // pred_check_branch
        %261 = sbr.rel (%p259) target = $region44
      $region43: #{resnet_block_forward.1} parent=5 // pred_region
        // Predicated region
        $region45: #{resnet_block_forward.1} parent=43 // pred_check
          %p262 = pneg %p35
        $region46: #{resnet_block_forward.1} parent=43 // pred_check_branch
          %264 = sbr.rel (%p262) target = $region48
        $region47: #{resnet_block_forward.1} parent=43 // pred_region
          %p265 = scmp.lt.s32.totalorder %s15, 1
          %s266 = scalar_select %p265, %s15, 1
          %s267 = smul.addr %s266, 2
          %s268 = smul.addr %s267, 4
          %s269 = scalar_lea.vmem %s0, %s268
        $region48: #{resnet_block_forward.1} parent=43 // pred_fallthru
          _
      $region44: #{resnet_block_forward.1} parent=5 // pred_fallthru
        _
      %p270 = scmp.le.s32.totalorder 1, %s15
      %p271 = scmp.lt.s32.totalorder %s15, 3
      %p272 = pnand %p270, %p271
      %p273 = pneg %p272
      // Predicated region
      $region49: #{resnet_block_forward.1} parent=5 // pred_check
        _
      $region50: #{resnet_block_forward.1} parent=5 // pred_check_branch
        %275 = sbr.rel (%p272) target = $region52
      $region51: #{resnet_block_forward.1} parent=5 // pred_region
        %s276 = ssub.s32 %s15, 1
        // Predicated region
        $region53: #{resnet_block_forward.1} parent=51 // pred_check
          %p277 = pneg %p188
        $region54: #{resnet_block_forward.1} parent=51 // pred_check_branch
          %279 = sbr.rel (%p277) target = $region56
        $region55: #{resnet_block_forward.1} parent=51 // pred_region
          %280 = dma.done [#allocation3], 16
        $region56: #{resnet_block_forward.1} parent=51 // pred_fallthru
          _
        %281 = sfence
        %p282 = scmp.lt.s32.totalorder %s20, 1
        %s283 = scalar_select %p282, %s20, 1
        %s284 = smul.addr %s283, 2
        %s285 = smul.addr %s284, 4
        %s286 = scalar_lea.vmem %s0, %s285
        %p287 = pneg %p41
        %p288 = pneg %p38
        %p289 = pneg %p62
        %p290 = pneg %p59
        %p291 = pneg %p83
        %p292 = pneg %p80
        %p293 = pneg %p104
        %p294 = pneg %p101
        %p295 = pneg %p125
        %p296 = pneg %p122
        %p297 = pneg %p146
        %p298 = pneg %p143
        %p299 = pneg %p167
        %p300 = pneg %p164
        %p301 = pneg %p188
        %p302 = pneg %p185
        %p303 = pneg %p214
        %p304 = pneg %p211
        %p305 = scmp.lt.s32.totalorder %s20, 1
        %s306 = scalar_select %p305, %s20, 1
        %s307 = smul.addr %s306, 2
        %s308 = smul.addr %s307, 4
        %s309 = scalar_lea.vmem %s8, %s308
        %p310 = scmp.lt.s32.totalorder %s20, 1
        %s311 = scalar_select %p310, %s20, 1
        %s312 = smul.addr %s311, 2
        %s313 = smul.addr %s312, 4
        %s314 = scalar_lea.vmem %s0, %s313
        %p315 = scmp.lt.s32.totalorder %s20, 1
        %s316 = scalar_select %p315, %s20, 1
        %s317 = smul.addr %s316, 2
        %s318 = smul.addr %s317, 4
        %s319 = scalar_lea.vmem %s8, %s318
        %v321 = vld [vmem:[%s314] sm:$0xff]
        %v322 = vlaneseq
        %v323 = vand.u32 %v322, 127
        %v324 = vadd.s32 %v323, 128
        %vm325 = vcmp.lt.s32.totalorder %v323, 0
        %v326 = vsub.s32 0, %v323
        %v327 = vsel %vm325, %v326, %v323
        %v328 = vshrl.u32 %v327, 4
        %v329 = vand.u32 %v327, 15
        %v330 = vsub.s32 0, %v329
        %v331 = vsel %vm325, %v330, %v329
        %vm332 = vcmp.lt.s32.totalorder %v324, 0
        %v333 = vsub.s32 0, %v324
        %v334 = vsel %vm332, %v333, %v324
        %v335 = vshrl.u32 %v334, 4
        %v336 = vand.u32 %v334, 15
        %v337 = vsub.s32 0, %v336
        %v338 = vsel %vm332, %v337, %v336
        %vm339 = vcmp.ne.s32.totalorder %v331, 0
        %vm340 = vcmp.ne.s32.totalorder %v338, 0
        %vm341 = vcmp.lt.s32.totalorder %v331, 0
        %vm342 = vcmp.lt.s32.totalorder %v338, 0
        %vm343 = vmand %vm341, %vm339
        %vm344 = vmand %vm342, %vm340
        %v345 = vadd.s32 %v331, 16
        %v346 = vadd.s32 %v338, 16
        %v347 = vsel %vm343, %v345, %v331
        %v348 = vsel %vm344, %v346, %v338
        %vm349 = vcmp.ge.s32.totalorder %v347, 1
        %vm350 = vcmp.ge.s32.totalorder %v348, 1
        %vm351 = vcmp.le.s32.totalorder %v347, 14
        %vm352 = vcmp.le.s32.totalorder %v348, 14
        %s353 = sld [smem:[#allocation2]]
        %s354 = sld [smem:[#allocation2 + $0x1]]
        %v355 = vld [vmem:[%s1] sm:$0x3]
        %v356 = vld [vmem:[%s3] sm:$0xf]
        %v358 = vcombine.high %v321, %v321
        %359 = vrot.lane.b32.xlu0 %v321, 17
        %v360 = vpop.permute.xlu0 %359
        %361 = vrot.lane.b32.xlu0 %v358, 17
        %v362 = vpop.permute.xlu0 %361
        %vm363 = vcmask 138240
        %v364 = vsel %vm363, %v360, %v362
        %v368 = vsel %vm363, 0.0, %v360
        %v369 = vsel %vm363, %v362, 0.0
        %v370 = vsel %vm349, 1, 0
        %v371 = vsel %vm350, 1, 0
        %vm372 = vcmp.eq.s32.totalorder %v370, 1
        %vm373 = vcmp.eq.s32.totalorder %v371, 1
        %v374 = vsel %vm372, %v368, 0.0
        %v375 = vsel %vm373, %v364, 0.0
        %v376 = vsel %vm351, 1, 0
        %v377 = vsel %vm352, 1, 0
        %vm378 = vcmp.eq.s32.totalorder %v376, 1
        %vm379 = vcmp.eq.s32.totalorder %v377, 1
        %382 = vrot.lane.b32.xlu0 %v368, 126
        %v383 = vpop.permute.xlu0 %382
        %384 = vrot.lane.b32.xlu0 %v364, 126
        %v385 = vpop.permute.xlu0 %384
        %386 = vrot.lane.b32.xlu0 %v369, 126
        %v387 = vpop.permute.xlu0 %386
        %vm388 = vcmask 1031168
        %v389 = vsel %vm388, %v383, %v385
        %v390 = vsel %vm388, %v385, %v387
        %v393 = vsel %vm378, %v389, 0.0
        %v394 = vsel %vm379, %v390, 0.0
        %395 = vrot.lane.b32.xlu0 %v368, 112
        %v396 = vpop.permute.xlu0 %395
        %397 = vrot.lane.b32.xlu0 %v364, 112
        %v398 = vpop.permute.xlu0 %397
        %399 = vrot.lane.b32.xlu0 %v369, 112
        %v400 = vpop.permute.xlu0 %399
        %vm401 = vcmask 916480
        %v402 = vsel %vm401, %v396, %v398
        %v403 = vsel %vm401, %v398, %v400
        %v406 = vsel %vm372, %v402, 0.0
        %v407 = vsel %vm373, %v403, 0.0
        %408 = vrot.lane.b32.xlu0 %v368, 110
        %v409 = vpop.permute.xlu0 %408
        %410 = vrot.lane.b32.xlu0 %v364, 110
        %v411 = vpop.permute.xlu0 %410
        %412 = vrot.lane.b32.xlu0 %v369, 110
        %v413 = vpop.permute.xlu0 %412
        %vm414 = vcmask 900096
        %v415 = vsel %vm414, %v409, %v411
        %v416 = vsel %vm414, %v411, %v413
        %v419 = vsel %vm378, %v415, 0.0
        %v420 = vsel %vm379, %v416, 0.0
        %421 = vrot.lane.b32.xlu0 %v368, 96
        %v422 = vpop.permute.xlu0 %421
        %423 = vrot.lane.b32.xlu0 %v364, 96
        %v424 = vpop.permute.xlu0 %423
        %425 = vrot.lane.b32.xlu0 %v369, 96
        %v426 = vpop.permute.xlu0 %425
        %vm427 = vcmask 785408
        %v428 = vsel %vm427, %v422, %v424
        %v429 = vsel %vm427, %v424, %v426
        %v432 = vsel %vm372, %v428, 0.0
        %v433 = vsel %vm373, %v429, 0.0
        %434 = vrot.lane.b32.xlu0 %v368, 94
        %v435 = vpop.permute.xlu0 %434
        %436 = vrot.lane.b32.xlu0 %v364, 94
        %v437 = vpop.permute.xlu0 %436
        %438 = vrot.lane.b32.xlu0 %v369, 94
        %v439 = vpop.permute.xlu0 %438
        %vm440 = vcmask 769024
        %v441 = vsel %vm440, %v435, %v437
        %v442 = vsel %vm440, %v437, %v439
        %v445 = vsel %vm378, %v441, 0.0
        %v446 = vsel %vm379, %v442, 0.0
        %v447 = vrot.slane %v368, 4
        %v448 = vrot.slane %v364, 4
        %v449 = vrot.slane %v369, 4
        %450 = vrot.lane.b32.xlu0 %v447, 127
        %v451 = vpop.permute.xlu0 %450
        %452 = vrot.lane.b32.xlu0 %v448, 127
        %v453 = vpop.permute.xlu0 %452
        %454 = vrot.lane.b32.xlu0 %v449, 127
        %v455 = vpop.permute.xlu0 %454
        %vm456 = vcmask 1039360
        %v457 = vsel %vm456, %v451, %v453
        %v458 = vsel %vm456, %v453, %v455
        %v463 = vrot.slane %v406, 4
        %v464 = vrot.slane %v407, 4
        %467 = vrot.lane.b32.xlu0 %v368, 111
        %v468 = vpop.permute.xlu0 %467
        %469 = vrot.lane.b32.xlu0 %v364, 111
        %v470 = vpop.permute.xlu0 %469
        %471 = vrot.lane.b32.xlu0 %v369, 111
        %v472 = vpop.permute.xlu0 %471
        %vm473 = vcmask 908288
        %v474 = vsel %vm473, %v468, %v470
        %v475 = vsel %vm473, %v470, %v472
        %v480 = vrot.slane %v419, 4
        %v481 = vrot.slane %v420, 4
        %484 = vrot.lane.b32.xlu0 %v447, 95
        %v485 = vpop.permute.xlu0 %484
        %486 = vrot.lane.b32.xlu0 %v448, 95
        %v487 = vpop.permute.xlu0 %486
        %488 = vrot.lane.b32.xlu0 %v449, 95
        %v489 = vpop.permute.xlu0 %488
        %vm490 = vcmask 777216
        %v491 = vsel %vm490, %v485, %v487
        %v492 = vsel %vm490, %v487, %v489
        %vm495 = vcmask 1043456
        %v496 = vsel %vm495, %v374, %v457
        %v497 = vsel %vm495, %v375, %v458
        %v498 = vsel %vm495, %v393, %v463
        %v499 = vsel %vm495, %v394, %v464
        %v500 = vsel %vm495, %v474, %v480
        %v501 = vsel %vm495, %v475, %v481
        %v502 = vsel %vm495, %v432, %v491
        %v503 = vsel %vm495, %v433, %v492
        %v504 = vpack.c.bf16 %v498, %v496
        %v505 = vpack.c.bf16 %v499, %v497
        %v506 = vpack.c.bf16 %v502, %v500
        %v507 = vpack.c.bf16 %v503, %v501
        %v508 = vpack.c.bf16 %v445, %v445
        %v509 = vpack.c.bf16 %v446, %v446
        %511 = vset.pattern.permute.xlu0 0
        %512 = vperm.xlu0 %511, %v356
        %v513 = vpop.permute.xlu0 %512
        %vm515 = vcmask 293888
        %v517 = vsel %vm515, %v355, 0
        %vm519 = vcmask 1041408
        %v521 = vsel %vm519, %v508, 0
        %v524 = vsel %vm519, %v509, 0
        %526 = vmatprep.subr.bf16.mxu0 %v505
        %527 = vmatpush1.bf16.msra.mxu0 %v504
        %528 = vmatprep.subr.bf16.mxu0 %v507
        %529 = vmatpush1.bf16.msra.mxu0 %v506
        %530 = vmatprep.subr.bf16.mxu0 %v524
        %531 = vmatpush1.bf16.msra.mxu0 %v521
        %532 = vmatprep.subr.bf16.mxu0 0
        %533 = vmatpush1.bf16.msra.mxu0 0
        %534 = vmatprep.subr.bf16.mxu0 0
        %535 = vmatpush1.bf16.msra.mxu0 0
        %536 = vmatprep.subr.bf16.mxu0 0
        %537 = vmatpush1.bf16.msra.mxu0 0
        %538 = vmatprep.subr.bf16.mxu0 0
        %539 = vmatpush1.bf16.msra.mxu0 0
        %540 = vmatprep.subr.bf16.mxu0 0
        %541 = vmatpush1.bf16.msra.mxu0 0
        %542 = vmatprep.subr.bf16.mxu0 0
        %543 = vmatpush1.bf16.msra.mxu0 0
        %544 = vmatprep.subr.bf16.mxu0 0
        %545 = vmatpush1.bf16.msra.mxu0 0
        %546 = vmatprep.subr.bf16.mxu0 0
        %547 = vmatpush1.bf16.msra.mxu0 0
        %548 = vmatprep.subr.bf16.mxu0 0
        %549 = vmatpush1.bf16.msra.mxu0 0
        %550 = vmatprep.subr.bf16.mxu0 0
        %551 = vmatpush1.bf16.msra.mxu0 0
        %552 = vmatprep.subr.bf16.mxu0 0
        %553 = vmatpush1.bf16.msra.mxu0 0
        %554 = vmatprep.subr.bf16.mxu0 0
        %555 = vmatpush1.bf16.msra.mxu0 0
        %556 = vmatprep.subr.bf16.mxu0 0
        %557 = vmatpush1.bf16.msra.mxu0 0
        %558 = vmatprep.mubr.bf16.mxu0 0
        %559 = vmatmul.mubr.bf16.gmra.mrb[0].mxu0 %v517
        %v560 = vpop.f32.mrb[0].mxu0
        %v561 = vadd.f32 %v513, %v560
        %v562 = vpop.f32.mrb[0].mxu0
        %v563 = vadd.f32 %v513, %v562
        %v564 = vpop.f32.mrb[0].mxu0
        %v565 = vpop.f32.mrb[0].mxu0
        %566 = vdwg.mxu0
        %v567 = vmax.f32 %v561, 0.0
        %v568 = vmax.f32 %v563, 0.0
        %v569 = vmin.f32 %v561, 0.0
        %v570 = vmin.f32 %v563, 0.0
        %v571 = vstv %s353
        %v572 = vmul.f32 %v571, %v569
        %v573 = vmul.f32 %v571, %v570
        %v574 = vadd.f32 %v567, %v572
        %v575 = vadd.f32 %v568, %v573
        %v576 = vld [vmem:[%s4] sm:$0xf]
        %578 = vset.pattern.permute.xlu0 0
        %579 = vperm.xlu0 %578, %v576
        %v580 = vpop.permute.xlu0 %579
        %v582 = vmul.f32 %v574, %v580
        %v583 = vmul.f32 %v575, %v580
        %v584 = vld [vmem:[%s5] sm:$0xf]
        %586 = vset.pattern.permute.xlu0 0
        %587 = vperm.xlu0 %586, %v584
        %v588 = vpop.permute.xlu0 %587
        %v590 = vadd.f32 %v582, %v588
        %v591 = vadd.f32 %v583, %v588
        %v592 = vld [vmem:[%s2] sm:$0x3]
        %v593 = vld [vmem:[%s6] sm:$0xf]
        %596 = vrot.lane.b32.xlu0 %v590, 17
        %v597 = vpop.permute.xlu0 %596
        %598 = vrot.lane.b32.xlu0 %v591, 17
        %v599 = vpop.permute.xlu0 %598
        %v600 = vsel %vm363, %v597, %v599
        %v604 = vsel %vm363, 0.0, %v597
        %v605 = vsel %vm363, %v599, 0.0
        %v606 = vsel %vm372, %v604, 0.0
        %v607 = vsel %vm373, %v600, 0.0
        %610 = vrot.lane.b32.xlu0 %v604, 126
        %v611 = vpop.permute.xlu0 %610
        %612 = vrot.lane.b32.xlu0 %v600, 126
        %v613 = vpop.permute.xlu0 %612
        %614 = vrot.lane.b32.xlu0 %v605, 126
        %v615 = vpop.permute.xlu0 %614
        %v616 = vsel %vm388, %v611, %v613
        %v617 = vsel %vm388, %v613, %v615
        %v620 = vsel %vm378, %v616, 0.0
        %v621 = vsel %vm379, %v617, 0.0
        %622 = vrot.lane.b32.xlu0 %v604, 112
        %v623 = vpop.permute.xlu0 %622
        %624 = vrot.lane.b32.xlu0 %v600, 112
        %v625 = vpop.permute.xlu0 %624
        %626 = vrot.lane.b32.xlu0 %v605, 112
        %v627 = vpop.permute.xlu0 %626
        %v628 = vsel %vm401, %v623, %v625
        %v629 = vsel %vm401, %v625, %v627
        %v632 = vsel %vm372, %v628, 0.0
        %v633 = vsel %vm373, %v629, 0.0
        %634 = vrot.lane.b32.xlu0 %v604, 110
        %v635 = vpop.permute.xlu0 %634
        %636 = vrot.lane.b32.xlu0 %v600, 110
        %v637 = vpop.permute.xlu0 %636
        %638 = vrot.lane.b32.xlu0 %v605, 110
        %v639 = vpop.permute.xlu0 %638
        %v640 = vsel %vm414, %v635, %v637
        %v641 = vsel %vm414, %v637, %v639
        %v644 = vsel %vm378, %v640, 0.0
        %v645 = vsel %vm379, %v641, 0.0
        %646 = vrot.lane.b32.xlu0 %v604, 96
        %v647 = vpop.permute.xlu0 %646
        %648 = vrot.lane.b32.xlu0 %v600, 96
        %v649 = vpop.permute.xlu0 %648
        %650 = vrot.lane.b32.xlu0 %v605, 96
        %v651 = vpop.permute.xlu0 %650
        %v652 = vsel %vm427, %v647, %v649
        %v653 = vsel %vm427, %v649, %v651
        %v656 = vsel %vm372, %v652, 0.0
        %v657 = vsel %vm373, %v653, 0.0
        %658 = vrot.lane.b32.xlu0 %v604, 94
        %v659 = vpop.permute.xlu0 %658
        %660 = vrot.lane.b32.xlu0 %v600, 94
        %v661 = vpop.permute.xlu0 %660
        %662 = vrot.lane.b32.xlu0 %v605, 94
        %v663 = vpop.permute.xlu0 %662
        %v664 = vsel %vm440, %v659, %v661
        %v665 = vsel %vm440, %v661, %v663
        %v668 = vsel %vm378, %v664, 0.0
        %v669 = vsel %vm379, %v665, 0.0
        %v670 = vrot.slane %v604, 4
        %v671 = vrot.slane %v600, 4
        %v672 = vrot.slane %v605, 4
        %673 = vrot.lane.b32.xlu0 %v670, 127
        %v674 = vpop.permute.xlu0 %673
        %675 = vrot.lane.b32.xlu0 %v671, 127
        %v676 = vpop.permute.xlu0 %675
        %677 = vrot.lane.b32.xlu0 %v672, 127
        %v678 = vpop.permute.xlu0 %677
        %v679 = vsel %vm456, %v674, %v676
        %v680 = vsel %vm456, %v676, %v678
        %v685 = vrot.slane %v632, 4
        %v686 = vrot.slane %v633, 4
        %689 = vrot.lane.b32.xlu0 %v604, 111
        %v690 = vpop.permute.xlu0 %689
        %691 = vrot.lane.b32.xlu0 %v600, 111
        %v692 = vpop.permute.xlu0 %691
        %693 = vrot.lane.b32.xlu0 %v605, 111
        %v694 = vpop.permute.xlu0 %693
        %v695 = vsel %vm473, %v690, %v692
        %v696 = vsel %vm473, %v692, %v694
        %v701 = vrot.slane %v644, 4
        %v702 = vrot.slane %v645, 4
        %705 = vrot.lane.b32.xlu0 %v670, 95
        %v706 = vpop.permute.xlu0 %705
        %707 = vrot.lane.b32.xlu0 %v671, 95
        %v708 = vpop.permute.xlu0 %707
        %709 = vrot.lane.b32.xlu0 %v672, 95
        %v710 = vpop.permute.xlu0 %709
        %v711 = vsel %vm490, %v706, %v708
        %v712 = vsel %vm490, %v708, %v710
        %v715 = vsel %vm495, %v606, %v679
        %v716 = vsel %vm495, %v607, %v680
        %v717 = vsel %vm495, %v620, %v685
        %v718 = vsel %vm495, %v621, %v686
        %v719 = vsel %vm495, %v695, %v701
        %v720 = vsel %vm495, %v696, %v702
        %v721 = vsel %vm495, %v656, %v711
        %v722 = vsel %vm495, %v657, %v712
        %v723 = vpack.c.bf16 %v717, %v715
        %v724 = vpack.c.bf16 %v718, %v716
        %v725 = vpack.c.bf16 %v721, %v719
        %v726 = vpack.c.bf16 %v722, %v720
        %v727 = vpack.c.bf16 %v668, %v668
        %v728 = vpack.c.bf16 %v669, %v669
        %730 = vset.pattern.permute.xlu0 0
        %731 = vperm.xlu0 %730, %v593
        %v732 = vpop.permute.xlu0 %731
        %v735 = vsel %vm515, %v592, 0
        %v738 = vsel %vm519, %v727, 0
        %v741 = vsel %vm519, %v728, 0
        %743 = vmatprep.subr.bf16.mxu0 %v724
        %744 = vmatpush1.bf16.msra.mxu0 %v723
        %745 = vmatprep.subr.bf16.mxu0 %v726
        %746 = vmatpush1.bf16.msra.mxu0 %v725
        %747 = vmatprep.subr.bf16.mxu0 %v741
        %748 = vmatpush1.bf16.msra.mxu0 %v738
        %749 = vmatprep.subr.bf16.mxu0 0
        %750 = vmatpush1.bf16.msra.mxu0 0
        %751 = vmatprep.subr.bf16.mxu0 0
        %752 = vmatpush1.bf16.msra.mxu0 0
        %753 = vmatprep.subr.bf16.mxu0 0
        %754 = vmatpush1.bf16.msra.mxu0 0
        %755 = vmatprep.subr.bf16.mxu0 0
        %756 = vmatpush1.bf16.msra.mxu0 0
        %757 = vmatprep.subr.bf16.mxu0 0
        %758 = vmatpush1.bf16.msra.mxu0 0
        %759 = vmatprep.subr.bf16.mxu0 0
        %760 = vmatpush1.bf16.msra.mxu0 0
        %761 = vmatprep.subr.bf16.mxu0 0
        %762 = vmatpush1.bf16.msra.mxu0 0
        %763 = vmatprep.subr.bf16.mxu0 0
        %764 = vmatpush1.bf16.msra.mxu0 0
        %765 = vmatprep.subr.bf16.mxu0 0
        %766 = vmatpush1.bf16.msra.mxu0 0
        %767 = vmatprep.subr.bf16.mxu0 0
        %768 = vmatpush1.bf16.msra.mxu0 0
        %769 = vmatprep.subr.bf16.mxu0 0
        %770 = vmatpush1.bf16.msra.mxu0 0
        %771 = vmatprep.subr.bf16.mxu0 0
        %772 = vmatpush1.bf16.msra.mxu0 0
        %773 = vmatprep.subr.bf16.mxu0 0
        %774 = vmatpush1.bf16.msra.mxu0 0
        %775 = vmatprep.mubr.bf16.mxu0 0
        %776 = vmatmul.mubr.bf16.gmra.mrb[0].mxu0 %v735
        %v777 = vpop.f32.mrb[0].mxu0
        %v778 = vadd.f32 %v732, %v777
        %v779 = vpop.f32.mrb[0].mxu0
        %v780 = vadd.f32 %v732, %v779
        %v781 = vpop.f32.mrb[0].mxu0
        %v782 = vpop.f32.mrb[0].mxu0
        %783 = vdwg.mxu0
        %v785 = vadd.f32 %v778, %v321
        %v786 = vadd.f32 %v780, %v358
        %v787 = vmax.f32 %v785, 0.0
        %v788 = vmax.f32 %v786, 0.0
        %v789 = vmin.f32 %v785, 0.0
        %v790 = vmin.f32 %v786, 0.0
        %v791 = vstv %s354
        %v792 = vmul.f32 %v791, %v789
        %v793 = vmul.f32 %v791, %v790
        %v794 = vadd.f32 %v787, %v792
        %v795 = vadd.f32 %v788, %v793
        %v798 = vcombine.low %v794, %v795
        %800 = vst [vmem:[%s319] sm:$0xff] %v798
        %p801 = scmp.lt.s32.totalorder %s20, 1
        %s802 = scalar_select %p801, %s20, 1
        %s803 = smul.addr %s802, 2
        %s804 = smul.addr %s803, 4
        %s805 = scalar_lea.vmem %s8, %s804
        // Predicated region
        $region57: #{resnet_block_forward.1} parent=51 // pred_check
          %p806 = pneg %p211
        $region58: #{resnet_block_forward.1} parent=51 // pred_check_branch
          %808 = sbr.rel (%p806) target = $region60
        $region59: #{resnet_block_forward.1} parent=51 // pred_region
          _
        $region60: #{resnet_block_forward.1} parent=51 // pred_fallthru
          _
      $region52: #{resnet_block_forward.1} parent=5 // pred_fallthru
        _
      %p809 = scmp.le.s32.totalorder 2, %s15
      // Predicated region
      $region61: #{resnet_block_forward.1} parent=5 // pred_check
        %p810 = pneg %p809
      $region62: #{resnet_block_forward.1} parent=5 // pred_check_branch
        %812 = sbr.rel (%p810) target = $region64
      $region63: #{resnet_block_forward.1} parent=5 // pred_region
        %s813 = ssub.s32 %s15, 2
        // Predicated region
        $region65: #{resnet_block_forward.1} parent=63 // pred_check
          %p814 = pneg %p217
        $region66: #{resnet_block_forward.1} parent=63 // pred_check_branch
          %816 = sbr.rel (%p814) target = $region68
        $region67: #{resnet_block_forward.1} parent=63 // pred_region
          %p817 = scmp.lt.s32.totalorder %s21, 1
          %s818 = scalar_select %p817, %s21, 1
          %s819 = smul.addr %s818, 2
          %s820 = smul.addr %s819, 4
          %s821 = scalar_lea.vmem %s8, %s820
        $region68: #{resnet_block_forward.1} parent=63 // pred_fallthru
          _
      $region64: #{resnet_block_forward.1} parent=5 // pred_fallthru
        _
    $region6: #{resnet_block_forward.1} parent=1 // loop_footer
      %s19 = sadd.s32 1, %s15
    $region7: #{resnet_block_forward.1} parent=1 // loop_footer_branch
      %14 = sbr.rel target = $region3
    $region8: #{resnet_block_forward.1} parent=1 // loop_exit
      _
    %822 = vsyncpa [#allocation3], 1
    %s823 = scalar_lea.sflag [#allocation3], 1
    %824 = vsyncpa %s823, 1

</llo_original>
